<compile_context>
chip_gen: v7x
topology: tpu7x:2x2x1
jax: 0.10.0
libtpu: 0.0.40
codegen_flags: <defaults>
</compile_context>

<pallas_src>
import math

import jax
import jax.numpy as jnp
from jax.experimental import pallas as pl
from jax.experimental.pallas import tpu as pltpu

BN_EPS = 1e-5
TILE_M_TARGET = 512            # per the measured tile-size sweep (>=85% roofline)
VMEM_LIMIT = 32 * 1024 * 1024  # explicit scoped-VMEM budget (safe on v5e/v6e/v7x)


def _pick_tile_m(m, target=TILE_M_TARGET):
    """Largest row-tile <= target that evenly divides M (multiple of 8)."""
    if m <= target:
        return m
    for t in range(target, 7, -1):
        if m % t == 0 and t % 8 == 0:
            return t
    return m  # fallback: single block


# ----------------------------------------------------------------------------
# Pass 1: tiled matmul (bf16 -> f32) + global per-channel sum / sum-of-squares.
# ----------------------------------------------------------------------------
def _mm_stats_kernel(x_ref, w_ref, y_ref, stats_ref, acc_ref):
    i = pl.program_id(0)

    @pl.when(i == 0)
    def _():
        acc_ref[...] = jnp.zeros_like(acc_ref)

    y = jnp.dot(x_ref[...], w_ref[...], preferred_element_type=jnp.float32)
    y_ref[...] = y
    s = jnp.sum(y, axis=0, keepdims=True)
    ss = jnp.sum(y * y, axis=0, keepdims=True)
    acc_ref[...] += jnp.concatenate([s, ss], axis=0)
    stats_ref[...] = acc_ref[...]   # final grid step leaves the complete sums


def matmul_stats(xm, wm):
    """xm (M, K) bf16, wm (K, Cout) bf16 -> y (M, Cout) f32, stats (2, Cout) f32."""
    m, k = xm.shape
    cout = wm.shape[1]
    tm = _pick_tile_m(m)
    grid = (m // tm,)
    return pl.pallas_call(
        _mm_stats_kernel,
        out_shape=(
            jax.ShapeDtypeStruct((m, cout), jnp.float32),
            jax.ShapeDtypeStruct((2, cout), jnp.float32),
        ),
        grid=grid,
        in_specs=[
            pl.BlockSpec((tm, k), lambda i: (i, 0)),      # activation tile
            pl.BlockSpec((k, cout), lambda i: (0, 0)),    # weight stays resident
        ],
        out_specs=(
            pl.BlockSpec((tm, cout), lambda i: (i, 0)),
            pl.BlockSpec((2, cout), lambda i: (0, 0)),    # resident accumulator out
        ),
        scratch_shapes=[pltpu.VMEM((2, cout), jnp.float32)],
        compiler_params=pltpu.CompilerParams(
            dimension_semantics=("arbitrary",),           # stats accumulate over M
            vmem_limit_bytes=VMEM_LIMIT,
        ),
    )(xm, wm)


# ----------------------------------------------------------------------------
# Pass 2: BatchNorm normalize + affine (+ residual / fused downsample BN) + ReLU.
# ----------------------------------------------------------------------------
def _bn_finalize(y, stats, g, b, m_total):
    mean = stats[0:1, :] / m_total
    var = jnp.maximum(stats[1:2, :] / m_total - mean * mean, 0.0)   # biased var
    return (y - mean) * jax.lax.rsqrt(var + BN_EPS) * g + b


def _make_bn_kernel(mode, relu, m_total):
    def kernel(*refs):
        if mode == "plain":
            y_ref, st_ref, g_ref, b_ref, o_ref = refs
        elif mode == "residual":
            y_ref, st_ref, g_ref, b_ref, r_ref, o_ref = refs
        else:  # "downsample": residual branch has its own conv output + BN
            (y_ref, st_ref, g_ref, b_ref,
             y2_ref, st2_ref, g2_ref, b2_ref, o_ref) = refs
        out = _bn_finalize(y_ref[...], st_ref[...], g_ref[...], b_ref[...], m_total)
        if mode == "residual":
            out = out + r_ref[...].astype(jnp.float32)
        elif mode == "downsample":
            out = out + _bn_finalize(y2_ref[...], st2_ref[...], g2_ref[...],
                                     b2_ref[...], m_total)
        if relu:
            out = jnp.maximum(out, 0.0)
        o_ref[...] = out.astype(o_ref.dtype)
    return kernel


def bn_act(y, stats, gamma, beta, *, relu, residual=None, down=None,
           out_dtype=jnp.bfloat16):
    m, cout = y.shape
    tm = _pick_tile_m(m)
    grid = (m // tm,)
    args = [y, stats,
            gamma.reshape(1, cout).astype(jnp.float32),
            beta.reshape(1, cout).astype(jnp.float32)]
    in_specs = [
        pl.BlockSpec((tm, cout), lambda i: (i, 0)),
        pl.BlockSpec((2, cout), lambda i: (0, 0)),
        pl.BlockSpec((1, cout), lambda i: (0, 0)),
        pl.BlockSpec((1, cout), lambda i: (0, 0)),
    ]
    if down is not None:
        mode = "downsample"
        y2, st2, g2, b2 = down
        args += [y2, st2,
                 g2.reshape(1, cout).astype(jnp.float32),
                 b2.reshape(1, cout).astype(jnp.float32)]
        in_specs += [
            pl.BlockSpec((tm, cout), lambda i: (i, 0)),
            pl.BlockSpec((2, cout), lambda i: (0, 0)),
            pl.BlockSpec((1, cout), lambda i: (0, 0)),
            pl.BlockSpec((1, cout), lambda i: (0, 0)),
        ]
    elif residual is not None:
        mode = "residual"
        args.append(residual)
        in_specs.append(pl.BlockSpec((tm, cout), lambda i: (i, 0)))
    else:
        mode = "plain"

    return pl.pallas_call(
        _make_bn_kernel(mode, relu, float(m)),
        out_shape=jax.ShapeDtypeStruct((m, cout), out_dtype),
        grid=grid,
        in_specs=in_specs,
        out_specs=pl.BlockSpec((tm, cout), lambda i: (i, 0)),
        compiler_params=pltpu.CompilerParams(
            dimension_semantics=("parallel",),            # megacore-shardable
            vmem_limit_bytes=VMEM_LIMIT,
        ),
    )(*args)


# ----------------------------------------------------------------------------
# Fused global average pool + Linear.
# ----------------------------------------------------------------------------
def _avgpool_fc_kernel(x_ref, w_ref, b_ref, o_ref):
    x = x_ref[...].astype(jnp.float32)          # (N, H*W, C)
    pooled = jnp.mean(x, axis=1)                # (N, C)
    o_ref[...] = jnp.dot(pooled, w_ref[...],
                         preferred_element_type=jnp.float32) + b_ref[...]


def avgpool_fc(x, w, b):
    n, h, wd, c = x.shape
    xr = x.reshape(n, h * wd, c)
    vspec = pl.BlockSpec(memory_space=pltpu.MemorySpace.VMEM)
    return pl.pallas_call(
        _avgpool_fc_kernel,
        out_shape=jax.ShapeDtypeStruct((n, w.shape[1]), jnp.float32),
        in_specs=[vspec, vspec, vspec],
        out_specs=vspec,
        compiler_params=pltpu.CompilerParams(vmem_limit_bytes=VMEM_LIMIT),
    )(xr, w.astype(jnp.float32), b.reshape(1, -1).astype(jnp.float32))


# ----------------------------------------------------------------------------
# Host-side glue: im2col (bf16 to halve its HBM traffic) + layer wiring.
# ----------------------------------------------------------------------------
def _im2col(x, kh, kw, stride, padding):
    n, h, w, c = x.shape
    xp = jnp.pad(x, ((0, 0), (padding, padding), (padding, padding), (0, 0)))
    oh = (h + 2 * padding - kh) // stride + 1
    ow = (w + 2 * padding - kw) // stride + 1
    cols = []
    for i in range(kh):
        for j in range(kw):
            cols.append(xp[:, i:i + stride * oh:stride, j:j + stride * ow:stride, :])
    patches = jnp.concatenate(cols, axis=-1)      # (N, OH, OW, KH*KW*C)
    return patches.reshape(n * oh * ow, kh * kw * c), oh, ow


def conv_bn(x, w, gamma, beta, *, stride, padding, relu):
    """x: NHWC. w: (KH, KW, Cin, Cout). Returns NHWC bf16."""
    kh, kw, cin, cout = w.shape
    n = x.shape[0]
    xm, oh, ow = _im2col(x.astype(jnp.bfloat16), kh, kw, stride, padding)
    wm = w.reshape(kh * kw * cin, cout).astype(jnp.bfloat16)
    y, stats = matmul_stats(xm, wm)
    out = bn_act(y, stats, gamma, beta, relu=relu)
    return out.reshape(n, oh, ow, cout)


def basic_block(x, blk):
    stride = blk["stride"]
    n, h, w, cin = x.shape
    out1 = conv_bn(x, blk["conv1"], blk["bn1_g"], blk["bn1_b"],
                   stride=stride, padding=1, relu=True)
    # conv2 (3x3, stride 1) matmul + stats
    cout = blk["conv2"].shape[-1]
    xm2, oh, ow = _im2col(out1, 3, 3, 1, 1)
    wm2 = blk["conv2"].reshape(9 * cout, cout).astype(jnp.bfloat16)
    y2, st2 = matmul_stats(xm2, wm2)
    if "down_conv" in blk:
        # 1x1 stride-s downsample: pure spatial subsample, no im2col inflation;
        # its BN is fused into the final normalize+add+ReLU kernel.
        x_ds = x[:, ::stride, ::stride, :].reshape(n * oh * ow, cin)
        x_ds = x_ds.astype(jnp.bfloat16)
        wd = blk["down_conv"].reshape(cin, cout).astype(jnp.bfloat16)
        yd, std = matmul_stats(x_ds, wd)
        out = bn_act(y2, st2, blk["bn2_g"], blk["bn2_b"], relu=True,
                     down=(yd, std, blk["down_bn_g"], blk["down_bn_b"]))
    else:
        res = x.astype(jnp.bfloat16).reshape(n * oh * ow, cout)
        out = bn_act(y2, st2, blk["bn2_g"], blk["bn2_b"], relu=True, residual=res)
    return out.reshape(n, oh, ow, cout)


def resnet_forward(x_nchw, params):
    x = jnp.transpose(x_nchw, (0, 2, 3, 1))      # NCHW -> NHWC
    x = conv_bn(x, params["conv1"], params["bn1_g"], params["bn1_b"],
                stride=1, padding=1, relu=True)
    for li in (1, 2, 3):
        for blk in params[f"layer{li}"]:
            x = basic_block(x, blk)
    return avgpool_fc(x, params["fc_w"], params["fc_b"])


# ----------------------------------------------------------------------------
# Deterministic parameter init (mirrors the PyTorch __init__).
# ----------------------------------------------------------------------------
def init_params(key, layers=(1, 1, 1), num_classes=10):
    def conv_w(k, kh, kw, cin, cout):
        n = kh * kw * cout                      # m.weight.data.normal_(0, sqrt(2/n))
        return jax.random.normal(k, (kh, kw, cin, cout), jnp.float32) * math.sqrt(2.0 / n)

    keys = iter(jax.random.split(key, 64))
    params = {
        "conv1": conv_w(next(keys), 3, 3, 3, 32),
        "bn1_g": jnp.ones((32,), jnp.float32),
        "bn1_b": jnp.zeros((32,), jnp.float32),
    }
    planes_plan = (32, 64, 128)
    inplanes = 32
    for li, (planes, nblocks) in enumerate(zip(planes_plan, layers), start=1):
        blocks = []
        for bi in range(nblocks):
            stride = 2 if bi == 0 else 1
            blk = {
                "conv1": conv_w(next(keys), 3, 3, inplanes, planes),
                "bn1_g": jnp.ones((planes,), jnp.float32),
                "bn1_b": jnp.zeros((planes,), jnp.float32),
                "conv2": conv_w(next(keys), 3, 3, planes, planes),
                "bn2_g": jnp.ones((planes,), jnp.float32),
                "bn2_b": jnp.zeros((planes,), jnp.float32),
                "stride": stride,
            }
            if stride != 1 or inplanes != planes:
                blk["down_conv"] = conv_w(next(keys), 1, 1, inplanes, planes)
                blk["down_bn_g"] = jnp.ones((planes,), jnp.float32)
                blk["down_bn_b"] = jnp.zeros((planes,), jnp.float32)
            blocks.append(blk)
            inplanes = planes
        params[f"layer{li}"] = blocks
    fc_in = planes_plan[-1]                     # 128 * expansion(=1)
    bound = 1.0 / math.sqrt(fc_in)              # nn.Linear default init
    params["fc_w"] = jax.random.uniform(next(keys), (fc_in, num_classes),
                                        jnp.float32, -bound, bound)
    params["fc_b"] = jax.random.uniform(next(keys), (num_classes,),
                                        jnp.float32, -bound, bound)
    return params


if __name__ == "__main__":
    key = jax.random.PRNGKey(0)
    kp, kx = jax.random.split(key)
    params = init_params(kp, layers=(1, 1, 1), num_classes=10)
    x = jax.random.normal(kx, (4, 3, 16, 16), jnp.float32)   # NCHW (conv1 is 3->32)
    logits = resnet_forward(x, params)
    jax.block_until_ready(logits)
    assert logits.shape == (4, 10) and logits.dtype == jnp.float32
    assert bool(jnp.all(jnp.isfinite(logits)))
    print("KERNEL_OK")
</pallas_src>

<mosaic_0001>
module attributes {stable_mosaic.version = 11 : i64} {
  func.func @_mm_stats_kernel(%arg0: i32, %arg1: memref<512x27xbf16, #tpu.memory_space<vmem>>, %arg2: memref<27x32xbf16, #tpu.memory_space<vmem>>, %arg3: memref<512x32xf32, #tpu.memory_space<vmem>>, %arg4: memref<2x32xf32, #tpu.memory_space<vmem>>, %arg5: memref<2x32xf32, #tpu.memory_space<vmem>>) attributes {dimension_semantics = [#tpu.dimension_semantics<arbitrary>], iteration_bounds = array<i64: 2>, scalar_prefetch = 0 : i64, scratch_operands = 1 : i64, tpu.core_type = #tpu.core_type<tc>, window_params = [{transform_indices = @transform_0, window_bounds = array<i64: 512, 27>}, {pipeline_mode = #tpu.pipeline_mode<synchronous>, transform_indices = @transform_1, window_bounds = array<i64: 27, 32>}, {transform_indices = @transform_2, window_bounds = array<i64: 512, 32>}, {pipeline_mode = #tpu.pipeline_mode<synchronous>, transform_indices = @transform_3, window_bounds = array<i64: 2, 32>}]} {
    %c0_i32 = arith.constant 0 : i32
    %0 = arith.cmpi eq, %arg0, %c0_i32 : i32
    %1 = arith.extui %0 : i1 to i32
    %c0_i32_0 = arith.constant 0 : i32
    %2 = arith.cmpi ne, %1, %c0_i32_0 : i32
    scf.if %2 {
      %cst_16 = arith.constant 0.000000e+00 : f32
      %18 = vector.broadcast %cst_16 : f32 to vector<2x32xf32>
      %c0_17 = arith.constant 0 : index
      %c0_18 = arith.constant 0 : index
      %19 = vector.load %arg5[%c0_17, %c0_18] : memref<2x32xf32, #tpu.memory_space<vmem>>, vector<2x32xf32>
      tpu.vector_store %arg5[%c0_17, %c0_18], %18 {strides = array<i32>} : memref<2x32xf32, #tpu.memory_space<vmem>>, vector<2x32xf32>,
    } else {
    }
    %c0 = arith.constant 0 : index
    %c0_1 = arith.constant 0 : index
    %3 = vector.load %arg1[%c0, %c0_1] : memref<512x27xbf16, #tpu.memory_space<vmem>>, vector<512x27xbf16>
    %c0_2 = arith.constant 0 : index
    %c0_3 = arith.constant 0 : index
    %4 = vector.load %arg2[%c0_2, %c0_3] : memref<27x32xbf16, #tpu.memory_space<vmem>>, vector<27x32xbf16>
    %cst = arith.constant dense<0.000000e+00> : vector<512x32xf32>
    %5 = tpu.matmul %3, %4, %cst {dimension_numbers = #tpu.dot_dimension_numbers<[1], [0], [0], [1], [0, 0, 1, 1], [], []>} : vector<512x27xbf16>, vector<27x32xbf16>, vector<512x32xf32> -> vector<512x32xf32>
    %c0_4 = arith.constant 0 : index
    %c0_5 = arith.constant 0 : index
    %6 = vector.load %arg3[%c0_4, %c0_5] : memref<512x32xf32, #tpu.memory_space<vmem>>, vector<512x32xf32>
    tpu.vector_store %arg3[%c0_4, %c0_5], %5 {strides = array<i32>} : memref<512x32xf32, #tpu.memory_space<vmem>>, vector<512x32xf32>,
    %cst_6 = arith.constant dense<0.000000e+00> : vector<32xf32>
    %7 = vector.multi_reduction <add>, %5, %cst_6 [0] : vector<512x32xf32> to vector<32xf32>
    %8 = vector.shape_cast %7 : vector<32xf32> to vector<1x32xf32>
    %9 = arith.mulf %5, %5 : vector<512x32xf32>
    %cst_7 = arith.constant dense<0.000000e+00> : vector<32xf32>
    %10 = vector.multi_reduction <add>, %9, %cst_7 [0] : vector<512x32xf32> to vector<32xf32>
    %11 = vector.shape_cast %10 : vector<32xf32> to vector<1x32xf32>
    %c0_8 = arith.constant 0 : index
    %c0_9 = arith.constant 0 : index
    %12 = vector.load %arg5[%c0_8, %c0_9] : memref<2x32xf32, #tpu.memory_space<vmem>>, vector<2x32xf32>
    %13 = tpu.concatenate %8, %11 in 0 : vector<1x32xf32>, vector<1x32xf32> -> vector<2x32xf32>
    %14 = arith.addf %12, %13 : vector<2x32xf32>
    %c0_10 = arith.constant 0 : index
    %c0_11 = arith.constant 0 : index
    %15 = vector.load %arg5[%c0_10, %c0_11] : memref<2x32xf32, #tpu.memory_space<vmem>>, vector<2x32xf32>
    tpu.vector_store %arg5[%c0_10, %c0_11], %14 {strides = array<i32>} : memref<2x32xf32, #tpu.memory_space<vmem>>, vector<2x32xf32>,
    %c0_12 = arith.constant 0 : index
    %c0_13 = arith.constant 0 : index
    %16 = vector.load %arg5[%c0_12, %c0_13] : memref<2x32xf32, #tpu.memory_space<vmem>>, vector<2x32xf32>
    %c0_14 = arith.constant 0 : index
    %c0_15 = arith.constant 0 : index
    %17 = vector.load %arg4[%c0_14, %c0_15] : memref<2x32xf32, #tpu.memory_space<vmem>>, vector<2x32xf32>
    tpu.vector_store %arg4[%c0_14, %c0_15], %16 {strides = array<i32>} : memref<2x32xf32, #tpu.memory_space<vmem>>, vector<2x32xf32>,
    return
  }
  func.func @transform_0(%arg0: i32) -> (i32, i32) {
    %c0_i32 = arith.constant 0 : i32
    %c0_i32_0 = arith.constant 0 : i32
    return %arg0, %c0_i32 : i32, i32
  }
  func.func @transform_1(%arg0: i32) -> (i32, i32) {
    %c0_i32 = arith.constant 0 : i32
    %c0_i32_0 = arith.constant 0 : i32
    %c0_i32_1 = arith.constant 0 : i32
    return %c0_i32, %c0_i32_0 : i32, i32
  }
  func.func @transform_2(%arg0: i32) -> (i32, i32) {
    %c0_i32 = arith.constant 0 : i32
    %c0_i32_0 = arith.constant 0 : i32
    return %arg0, %c0_i32 : i32, i32
  }
  func.func @transform_3(%arg0: i32) -> (i32, i32) {
    %c0_i32 = arith.constant 0 : i32
    %c0_i32_0 = arith.constant 0 : i32
    %c0_i32_1 = arith.constant 0 : i32
    return %c0_i32, %c0_i32_0 : i32, i32
  }
}

</mosaic_0001>

<llo_original>
// kernel: tpu_custom_call.1
$region0: #{tpu_custom_call.1}
  #allocation0 [shape = 'u32[]', space=smem, size = 0x4, offset = 0x4, fixed_abs, tag = 'smem constant byte address 0x4 - core index']
  #allocation1 [shape = 'u32[144,128]{1,0:T(1,128)}', space=vmem, size = 0x12000, scoped, tag = 'internal scratch']
  #allocation2 [shape = 'f32[2,32]{1,0:T(2,128)}', space=vmem, size = 0x400, scoped, tag = 'scratch operand']
  %s0 = inlined_call_operand.vmem [shape: bf16[1024,27], index: 0, kind: input, shape index: {}]
  %s1 = inlined_call_operand.vmem [shape: bf16[27,32], index: 1, kind: input, shape index: {}]
  %s2 = inlined_call_operand.vmem [shape: f32[1024,32], index: 2, kind: output, shape index: {0}]
  %s3 = inlined_call_operand.hbm [shape: f32[2,32], index: 3, kind: output, shape index: {1}]
  %4 = xla_tuple %s2, %s3
  %s5 = sld [smem:[#allocation0]]
  $region53: #{tpu_custom_call.1} parent=0
    _
  %s7 = ssub.s32 1, %s5
  %s8 = scalar_select 0, %s7, %s5
  $region1: #{tpu_custom_call.1} parent=0
    #allocation3 [shape = 'u8[1024]{0}', space=vmem, size = 0x400, scoped, tag = 'output window, operand 1, single buffered']
    #allocation4 [shape = 's32[2]{0}', space=sflag, size = 0x8, scoped, tag = 'scoped memory for tpu_custom_call.1']
    %9 = vsyncpa [#allocation4], 0
    loop: start=0, step=1, limit=4
    $region2: #{tpu_custom_call.1} parent=1 // loop_pre_header
      _
    $region3: #{tpu_custom_call.1} parent=1 // loop_header
      %s11 = sphi 0, %s15
      %p12 = scmp.ge.s32.totalorder %s11, 4
      %s21 = sphi 0, %s23
      %s24 = sphi 0, %s21
      %s25 = sphi 0, %s24
      %s41 = sphi 0, %s25
      %s45 = sphi 0, %s45
      %s47 = sphi 0, %s45
      %s48 = sphi 0, %s47
      %s62 = sphi 0, %s48
      %s68 = sphi 0, %s70
      %s71 = sphi 0, %s68
      %s72 = sphi 0, %s71
      %s88 = sphi 0, %s72
      %s92 = sphi 0, %s92
      %s94 = sphi 0, %s92
      %s95 = sphi 0, %s94
      %s109 = sphi 0, %s95
    $region4: #{tpu_custom_call.1} parent=1 // loop_header_branch
      %14 = sbr.rel (%p12) target = $region8
    $region5: #{tpu_custom_call.1} parent=1 // loop_body
      %s16 = ssub.s32 %s11, 1
      %s17 = ssub.s32 %s11, 2
      %s18 = sadd.s32 %s11, 1
      %s19 = ssub.s32 %s11, %s18
      %p20 = scmp.eq.s32.totalorder %s19, 0
      %s22 = sadd.s32 %s21, 1
      %s23 = scalar_select %p20, %s21, %s22
      %p26 = pneg %p20
      %p27 = scmp.eq.s32.totalorder %s11, 1
      %p28 = por %p26, %p27
      %p29 = scmp.ne.s32.totalorder %s21, %s24
      %p30 = scmp.eq.s32.totalorder %s11, 0
      %p31 = por %p29, %p30
      %p32 = scmp.ne.s32.totalorder %s21, %s24
      %p33 = scmp.eq.s32.totalorder %s16, 1
      %p34 = por %p32, %p33
      %p35 = scmp.ne.s32.totalorder %s24, %s25
      %p36 = scmp.eq.s32.totalorder %s16, 0
      %p37 = por %p35, %p36
      %p38 = scmp.ne.s32.totalorder %s24, %s25
      %p39 = scmp.eq.s32.totalorder %s17, 1
      %p40 = por %p38, %p39
      %p42 = scmp.ne.s32.totalorder %s25, %s41
      %p43 = scmp.eq.s32.totalorder %s17, 0
      %p44 = por %p42, %p43
      %s46 = sadd.s32 %s45, 1
      %p49 = scmp.eq.s32.totalorder %s11, 1
      %p50 = scmp.ne.s32.totalorder %s45, %s47
      %p51 = scmp.eq.s32.totalorder %s11, 0
      %p52 = por %p50, %p51
      %p53 = scmp.ne.s32.totalorder %s45, %s47
      %p54 = scmp.eq.s32.totalorder %s16, 1
      %p55 = por %p53, %p54
      %p56 = scmp.ne.s32.totalorder %s47, %s48
      %p57 = scmp.eq.s32.totalorder %s16, 0
      %p58 = por %p56, %p57
      %p59 = scmp.ne.s32.totalorder %s47, %s48
      %p60 = scmp.eq.s32.totalorder %s17, 1
      %p61 = por %p59, %p60
      %p63 = scmp.ne.s32.totalorder %s48, %s62
      %p64 = scmp.eq.s32.totalorder %s17, 0
      %p65 = por %p63, %p64
      %s66 = ssub.s32 %s11, %s18
      %p67 = scmp.eq.s32.totalorder %s66, 0
      %s69 = sadd.s32 %s68, 1
      %s70 = scalar_select %p67, %s68, %s69
      %p73 = pneg %p67
      %p74 = scmp.eq.s32.totalorder %s11, 1
      %p75 = por %p73, %p74
      %p76 = scmp.ne.s32.totalorder %s68, %s71
      %p77 = scmp.eq.s32.totalorder %s11, 0
      %p78 = por %p76, %p77
      %p79 = scmp.ne.s32.totalorder %s68, %s71
      %p80 = scmp.eq.s32.totalorder %s16, 1
      %p81 = por %p79, %p80
      %p82 = scmp.ne.s32.totalorder %s71, %s72
      %p83 = scmp.eq.s32.totalorder %s16, 0
      %p84 = por %p82, %p83
      %p85 = scmp.ne.s32.totalorder %s71, %s72
      %p86 = scmp.eq.s32.totalorder %s17, 1
      %p87 = por %p85, %p86
      %p89 = scmp.ne.s32.totalorder %s72, %s88
      %p90 = scmp.eq.s32.totalorder %s17, 0
      %p91 = por %p89, %p90
      %s93 = sadd.s32 %s92, 1
      %p96 = scmp.eq.s32.totalorder %s11, 1
      %p97 = scmp.ne.s32.totalorder %s92, %s94
      %p98 = scmp.eq.s32.totalorder %s11, 0
      %p99 = por %p97, %p98
      %p100 = scmp.ne.s32.totalorder %s92, %s94
      %p101 = scmp.eq.s32.totalorder %s16, 1
      %p102 = por %p100, %p101
      %p103 = scmp.ne.s32.totalorder %s94, %s95
      %p104 = scmp.eq.s32.totalorder %s16, 0
      %p105 = por %p103, %p104
      %p106 = scmp.ne.s32.totalorder %s94, %s95
      %p107 = scmp.eq.s32.totalorder %s17, 1
      %p108 = por %p106, %p107
      %p110 = scmp.ne.s32.totalorder %s95, %s109
      %p111 = scmp.eq.s32.totalorder %s17, 0
      %p112 = por %p110, %p111
      %p113 = scmp.le.s32.totalorder 1, %s11
      %p114 = scmp.lt.s32.totalorder %s11, 3
      %p115 = pnand %p113, %p114
      %p116 = pneg %p115
      // Predicated region
      $region9: #{tpu_custom_call.1} parent=5 // pred_check
        _
      $region10: #{tpu_custom_call.1} parent=5 // pred_check_branch
        %118 = sbr.rel (%p115) target = $region12
      $region11: #{tpu_custom_call.1} parent=5 // pred_region
        %s119 = ssub.s32 %s11, 1
        // Predicated region
        $region13: #{tpu_custom_call.1} parent=11 // pred_check
          %p120 = pneg %p58
        $region14: #{tpu_custom_call.1} parent=11 // pred_check_branch
          %122 = sbr.rel (%p120) target = $region16
        $region15: #{tpu_custom_call.1} parent=11 // pred_region
          _
        $region16: #{tpu_custom_call.1} parent=11 // pred_fallthru
          _
      $region12: #{tpu_custom_call.1} parent=5 // pred_fallthru
        _
      %p123 = scmp.lt.s32.totalorder %s11, 2
      // Predicated region
      $region17: #{tpu_custom_call.1} parent=5 // pred_check
        %p124 = pneg %p123
      $region18: #{tpu_custom_call.1} parent=5 // pred_check_branch
        %126 = sbr.rel (%p124) target = $region20
      $region19: #{tpu_custom_call.1} parent=5 // pred_region
        // Predicated region
        $region21: #{tpu_custom_call.1} parent=19 // pred_check
          %p127 = pneg %p31
        $region22: #{tpu_custom_call.1} parent=19 // pred_check_branch
          %129 = sbr.rel (%p127) target = $region24
        $region23: #{tpu_custom_call.1} parent=19 // pred_region
          %s130 = smul.u32 64, %s11
          %p131 = scmp.lt.s32.totalorder %s130, 127
          %s132 = scalar_select %p131, %s130, 127
          %s133 = smul.addr %s132, 4
          %s134 = scalar_lea.vmem %s0, %s133
          %s135 = smul.u32 64, %s11
        $region24: #{tpu_custom_call.1} parent=19 // pred_fallthru
          _
      $region20: #{tpu_custom_call.1} parent=5 // pred_fallthru
        _
      %p136 = scmp.le.s32.totalorder 1, %s11
      %p137 = scmp.lt.s32.totalorder %s11, 3
      %p138 = pnand %p136, %p137
      %p139 = pneg %p138
      // Predicated region
      $region25: #{tpu_custom_call.1} parent=5 // pred_check
        _
      $region26: #{tpu_custom_call.1} parent=5 // pred_check_branch
        %141 = sbr.rel (%p138) target = $region28
      $region27: #{tpu_custom_call.1} parent=5 // pred_region
        %s142 = ssub.s32 %s11, 1
        %s143 = smul.u32 64, %s16
        %p144 = scmp.lt.s32.totalorder %s143, 127
        %s145 = scalar_select %p144, %s143, 127
        %s146 = smul.addr %s145, 4
        %s147 = scalar_lea.vmem %s0, %s146
        %p148 = pneg %p37
        %p149 = pneg %p34
        %p150 = pneg %p58
        %p151 = pneg %p55
        %p152 = pneg %p84
        %p153 = pneg %p81
        %s154 = smul.u32 64, %s16
        %p155 = scmp.lt.s32.totalorder %s154, 127
        %s156 = scalar_select %p155, %s154, 127
        %s157 = smul.addr %s156, 8
        %s158 = scalar_lea.vmem %s2, %s157
        %p159 = pneg %p105
        %p160 = pneg %p102
        %s161 = smul.u32 64, %s16
        %p162 = scmp.lt.s32.totalorder %s161, 127
        %s163 = scalar_select %p162, %s161, 127
        %s164 = smul.addr %s163, 4
        %s165 = scalar_lea.vmem %s0, %s164
        %s166 = smul.u32 64, %s16
        %s167 = smul.u32 64, %s16
        %p168 = scmp.lt.s32.totalorder %s167, 127
        %s169 = scalar_select %p168, %s167, 127
        %s170 = smul.addr %s169, 8
        %s171 = scalar_lea.vmem %s2, %s170
        %s172 = smul.u32 64, %s16
        %p174 = scmp.eq.s32.totalorder %s16, 0
        // Predicated region
        $region29: #{tpu_custom_call.1} parent=27 // pred_check
          %p175 = pneg %p174
        $region30: #{tpu_custom_call.1} parent=27 // pred_check_branch
          %177 = sbr.rel (%p175) target = $region32
        $region31: #{tpu_custom_call.1} parent=27 // pred_region
          %vm178 = vcmask 254976
          %179 = vst.msk [vmem:[#allocation2] sm:$0x3] %vm178, 0.0
        $region32: #{tpu_custom_call.1} parent=27 // pred_fallthru
          _
        %v180 = vld [vmem:[%s165] sm:$0xf]
        %v181 = vld [vmem:[%s165 + $0x4] sm:$0xf]
        %v182 = vld [vmem:[%s165 + $0x8] sm:$0xf]
        %v183 = vld [vmem:[%s165 + $0xc] sm:$0xf]
        %v184 = vld [vmem:[%s165 + $0x10] sm:$0xf]
        %v185 = vld [vmem:[%s165 + $0x14] sm:$0xf]
        %v186 = vld [vmem:[%s165 + $0x18] sm:$0xf]
        %v187 = vld [vmem:[%s165 + $0x1c] sm:$0xf]
        %v188 = vld [vmem:[%s165 + $0x20] sm:$0xf]
        %v189 = vld [vmem:[%s165 + $0x24] sm:$0xf]
        %v190 = vld [vmem:[%s165 + $0x28] sm:$0xf]
        %v191 = vld [vmem:[%s165 + $0x2c] sm:$0xf]
        %v192 = vld [vmem:[%s165 + $0x30] sm:$0xf]
        %v193 = vld [vmem:[%s165 + $0x34] sm:$0xf]
        %v194 = vld [vmem:[%s165 + $0x38] sm:$0xf]
        %v195 = vld [vmem:[%s165 + $0x3c] sm:$0xf]
        %v196 = vld [vmem:[%s165 + $0x40] sm:$0xf]
        %v197 = vld [vmem:[%s165 + $0x44] sm:$0xf]
        %v198 = vld [vmem:[%s165 + $0x48] sm:$0xf]
        %v199 = vld [vmem:[%s165 + $0x4c] sm:$0xf]
        %v200 = vld [vmem:[%s165 + $0x50] sm:$0xf]
        %v201 = vld [vmem:[%s165 + $0x54] sm:$0xf]
        %v202 = vld [vmem:[%s165 + $0x58] sm:$0xf]
        %v203 = vld [vmem:[%s165 + $0x5c] sm:$0xf]
        %v204 = vld [vmem:[%s165 + $0x60] sm:$0xf]
        %v205 = vld [vmem:[%s165 + $0x64] sm:$0xf]
        %v206 = vld [vmem:[%s165 + $0x68] sm:$0xf]
        %v207 = vld [vmem:[%s165 + $0x6c] sm:$0xf]
        %v208 = vld [vmem:[%s165 + $0x70] sm:$0xf]
        %v209 = vld [vmem:[%s165 + $0x74] sm:$0xf]
        %v210 = vld [vmem:[%s165 + $0x78] sm:$0xf]
        %v211 = vld [vmem:[%s165 + $0x7c] sm:$0xf]
        %v212 = vld [vmem:[%s165 + $0x80] sm:$0xf]
        %v213 = vld [vmem:[%s165 + $0x84] sm:$0xf]
        %v214 = vld [vmem:[%s165 + $0x88] sm:$0xf]
        %v215 = vld [vmem:[%s165 + $0x8c] sm:$0xf]
        %v216 = vld [vmem:[%s165 + $0x90] sm:$0xf]
        %v217 = vld [vmem:[%s165 + $0x94] sm:$0xf]
        %v218 = vld [vmem:[%s165 + $0x98] sm:$0xf]
        %v219 = vld [vmem:[%s165 + $0x9c] sm:$0xf]
        %v220 = vld [vmem:[%s165 + $0xa0] sm:$0xf]
        %v221 = vld [vmem:[%s165 + $0xa4] sm:$0xf]
        %v222 = vld [vmem:[%s165 + $0xa8] sm:$0xf]
        %v223 = vld [vmem:[%s165 + $0xac] sm:$0xf]
        %v224 = vld [vmem:[%s165 + $0xb0] sm:$0xf]
        %v225 = vld [vmem:[%s165 + $0xb4] sm:$0xf]
        %v226 = vld [vmem:[%s165 + $0xb8] sm:$0xf]
        %v227 = vld [vmem:[%s165 + $0xbc] sm:$0xf]
        %v228 = vld [vmem:[%s165 + $0xc0] sm:$0xf]
        %v229 = vld [vmem:[%s165 + $0xc4] sm:$0xf]
        %v230 = vld [vmem:[%s165 + $0xc8] sm:$0xf]
        %v231 = vld [vmem:[%s165 + $0xcc] sm:$0xf]
        %v232 = vld [vmem:[%s165 + $0xd0] sm:$0xf]
        %v233 = vld [vmem:[%s165 + $0xd4] sm:$0xf]
        %v234 = vld [vmem:[%s165 + $0xd8] sm:$0xf]
        %v235 = vld [vmem:[%s165 + $0xdc] sm:$0xf]
        %v236 = vld [vmem:[%s165 + $0xe0] sm:$0xf]
        %v237 = vld [vmem:[%s165 + $0xe4] sm:$0xf]
        %v238 = vld [vmem:[%s165 + $0xe8] sm:$0xf]
        %v239 = vld [vmem:[%s165 + $0xec] sm:$0xf]
        %v240 = vld [vmem:[%s165 + $0xf0] sm:$0xf]
        %v241 = vld [vmem:[%s165 + $0xf4] sm:$0xf]
        %v242 = vld [vmem:[%s165 + $0xf8] sm:$0xf]
        %v243 = vld [vmem:[%s165 + $0xfc] sm:$0xf]
        %v244 = vld [vmem:[%s1] sm:$0xf]
        %v245 = vld [vmem:[%s1 + $0x4] sm:$0xf]
        %v246 = vld [vmem:[%s1 + $0x8] sm:$0xf]
        %v247 = vld [vmem:[%s1 + $0xc] sm:$0x3]
        %v312 = vunpack.c.l.b16 %v180
        %v313 = vunpack.c.l.b16 %v181
        %v314 = vunpack.c.l.b16 %v182
        %v315 = vunpack.c.l.b16 %v183
        %v316 = vunpack.c.l.b16 %v184
        %v317 = vunpack.c.l.b16 %v185
        %v318 = vunpack.c.l.b16 %v186
        %v319 = vunpack.c.l.b16 %v187
        %v320 = vunpack.c.l.b16 %v188
        %v321 = vunpack.c.l.b16 %v189
        %v322 = vunpack.c.l.b16 %v190
        %v323 = vunpack.c.l.b16 %v191
        %v324 = vunpack.c.l.b16 %v192
        %v325 = vunpack.c.l.b16 %v193
        %v326 = vunpack.c.l.b16 %v194
        %v327 = vunpack.c.l.b16 %v195
        %v328 = vunpack.c.l.b16 %v196
        %v329 = vunpack.c.l.b16 %v197
        %v330 = vunpack.c.l.b16 %v198
        %v331 = vunpack.c.l.b16 %v199
        %v332 = vunpack.c.l.b16 %v200
        %v333 = vunpack.c.l.b16 %v201
        %v334 = vunpack.c.l.b16 %v202
        %v335 = vunpack.c.l.b16 %v203
        %v336 = vunpack.c.l.b16 %v204
        %v337 = vunpack.c.l.b16 %v205
        %v338 = vunpack.c.l.b16 %v206
        %v339 = vunpack.c.l.b16 %v207
        %v340 = vunpack.c.l.b16 %v208
        %v341 = vunpack.c.l.b16 %v209
        %v342 = vunpack.c.l.b16 %v210
        %v343 = vunpack.c.l.b16 %v211
        %v344 = vunpack.c.l.b16 %v212
        %v345 = vunpack.c.l.b16 %v213
        %v346 = vunpack.c.l.b16 %v214
        %v347 = vunpack.c.l.b16 %v215
        %v348 = vunpack.c.l.b16 %v216
        %v349 = vunpack.c.l.b16 %v217
        %v350 = vunpack.c.l.b16 %v218
        %v351 = vunpack.c.l.b16 %v219
        %v352 = vunpack.c.l.b16 %v220
        %v353 = vunpack.c.l.b16 %v221
        %v354 = vunpack.c.l.b16 %v222
        %v355 = vunpack.c.l.b16 %v223
        %v356 = vunpack.c.l.b16 %v224
        %v357 = vunpack.c.l.b16 %v225
        %v358 = vunpack.c.l.b16 %v226
        %v359 = vunpack.c.l.b16 %v227
        %v360 = vunpack.c.l.b16 %v228
        %v361 = vunpack.c.l.b16 %v229
        %v362 = vunpack.c.l.b16 %v230
        %v363 = vunpack.c.l.b16 %v231
        %v364 = vunpack.c.l.b16 %v232
        %v365 = vunpack.c.l.b16 %v233
        %v366 = vunpack.c.l.b16 %v234
        %v367 = vunpack.c.l.b16 %v235
        %v368 = vunpack.c.l.b16 %v236
        %v369 = vunpack.c.l.b16 %v237
        %v370 = vunpack.c.l.b16 %v238
        %v371 = vunpack.c.l.b16 %v239
        %v372 = vunpack.c.l.b16 %v240
        %v373 = vunpack.c.l.b16 %v241
        %v374 = vunpack.c.l.b16 %v242
        %v375 = vunpack.c.l.b16 %v243
        %v376 = vpack.c.b16 %v313, %v312
        %v377 = vpack.c.b16 %v315, %v314
        %v378 = vpack.c.b16 %v317, %v316
        %v379 = vpack.c.b16 %v319, %v318
        %v380 = vpack.c.b16 %v321, %v320
        %v381 = vpack.c.b16 %v323, %v322
        %v382 = vpack.c.b16 %v325, %v324
        %v383 = vpack.c.b16 %v327, %v326
        %v384 = vpack.c.b16 %v329, %v328
        %v385 = vpack.c.b16 %v331, %v330
        %v386 = vpack.c.b16 %v333, %v332
        %v387 = vpack.c.b16 %v335, %v334
        %v388 = vpack.c.b16 %v337, %v336
        %v389 = vpack.c.b16 %v339, %v338
        %v390 = vpack.c.b16 %v341, %v340
        %v391 = vpack.c.b16 %v343, %v342
        %v392 = vpack.c.b16 %v345, %v344
        %v393 = vpack.c.b16 %v347, %v346
        %v394 = vpack.c.b16 %v349, %v348
        %v395 = vpack.c.b16 %v351, %v350
        %v396 = vpack.c.b16 %v353, %v352
        %v397 = vpack.c.b16 %v355, %v354
        %v398 = vpack.c.b16 %v357, %v356
        %v399 = vpack.c.b16 %v359, %v358
        %v400 = vpack.c.b16 %v361, %v360
        %v401 = vpack.c.b16 %v363, %v362
        %v402 = vpack.c.b16 %v365, %v364
        %v403 = vpack.c.b16 %v367, %v366
        %v404 = vpack.c.b16 %v369, %v368
        %v405 = vpack.c.b16 %v371, %v370
        %v406 = vpack.c.b16 %v373, %v372
        %v407 = vpack.c.b16 %v375, %v374
        %v412 = vunpack.c.l.b16 %v244
        %v413 = vunpack.c.l.b16 %v245
        %v414 = vunpack.c.l.b16 %v246
        %v415 = vunpack.c.l.b16 %v247
        %v416 = vpack.c.b16 %v413, %v412
        %v417 = vpack.c.b16 %v415, %v414
        %vm419 = vcmask 220160
        %v421 = vsel %vm419, %v376, 0
        %v424 = vsel %vm419, %v377, 0
        %v427 = vsel %vm419, %v378, 0
        %v430 = vsel %vm419, %v379, 0
        %v433 = vsel %vm419, %v380, 0
        %v436 = vsel %vm419, %v381, 0
        %v439 = vsel %vm419, %v382, 0
        %v442 = vsel %vm419, %v383, 0
        %v445 = vsel %vm419, %v384, 0
        %v448 = vsel %vm419, %v385, 0
        %v451 = vsel %vm419, %v386, 0
        %v454 = vsel %vm419, %v387, 0
        %v457 = vsel %vm419, %v388, 0
        %v460 = vsel %vm419, %v389, 0
        %v463 = vsel %vm419, %v390, 0
        %v466 = vsel %vm419, %v391, 0
        %v469 = vsel %vm419, %v392, 0
        %v472 = vsel %vm419, %v393, 0
        %v475 = vsel %vm419, %v394, 0
        %v478 = vsel %vm419, %v395, 0
        %v481 = vsel %vm419, %v396, 0
        %v484 = vsel %vm419, %v397, 0
        %v487 = vsel %vm419, %v398, 0
        %v490 = vsel %vm419, %v399, 0
        %v493 = vsel %vm419, %v400, 0
        %v496 = vsel %vm419, %v401, 0
        %v499 = vsel %vm419, %v402, 0
        %v502 = vsel %vm419, %v403, 0
        %v505 = vsel %vm419, %v404, 0
        %v508 = vsel %vm419, %v405, 0
        %v511 = vsel %vm419, %v406, 0
        %v514 = vsel %vm419, %v407, 0
        %vm516 = vcmask 1044480
        %vm517 = vcmask 1045504
        %v518 = vsel %vm516, 4294967295, 65535
        %v519 = vsel %vm517, %v518, 0
        %v521 = vand.u32 %v417, %v519
        %523 = vmatprep.subr.bf16.mxu0 0
        %524 = vmatpush1.bf16.msra.mxu0 %v416
        %525 = vmatprep.subr.bf16.mxu0 0
        %526 = vmatpush1.bf16.msra.mxu0 %v521
        %527 = vmatprep.subr.bf16.mxu0 0
        %528 = vmatpush1.bf16.msra.mxu0 0
        %529 = vmatprep.subr.bf16.mxu0 0
        %530 = vmatpush1.bf16.msra.mxu0 0
        %531 = vmatprep.subr.bf16.mxu0 0
        %532 = vmatpush1.bf16.msra.mxu0 0
        %533 = vmatprep.subr.bf16.mxu0 0
        %534 = vmatpush1.bf16.msra.mxu0 0
        %535 = vmatprep.subr.bf16.mxu0 0
        %536 = vmatpush1.bf16.msra.mxu0 0
        %537 = vmatprep.subr.bf16.mxu0 0
        %538 = vmatpush1.bf16.msra.mxu0 0
        %539 = vmatprep.subr.bf16.mxu0 0
        %540 = vmatpush1.bf16.msra.mxu0 0
        %541 = vmatprep.subr.bf16.mxu0 0
        %542 = vmatpush1.bf16.msra.mxu0 0
        %543 = vmatprep.subr.bf16.mxu0 0
        %544 = vmatpush1.bf16.msra.mxu0 0
        %545 = vmatprep.subr.bf16.mxu0 0
        %546 = vmatpush1.bf16.msra.mxu0 0
        %547 = vmatprep.subr.bf16.mxu0 0
        %548 = vmatpush1.bf16.msra.mxu0 0
        %549 = vmatprep.subr.bf16.mxu0 0
        %550 = vmatpush1.bf16.msra.mxu0 0
        %551 = vmatprep.subr.bf16.mxu0 0
        %552 = vmatpush1.bf16.msra.mxu0 0
        %553 = vmatprep.subr.bf16.mxu0 0
        %554 = vmatpush1.bf16.msra.mxu0 0
        %555 = vmatprep.mubr.bf16.mxu0 0
        %556 = vmatmul.mubr.bf16.gmra.mrb[0].mxu0 %v421
        %v557 = vpop.f32.mrb[0].mxu0
        %v558 = vadd.f32 0.0, %v557
        %v559 = vpop.f32.mrb[0].mxu0
        %v560 = vpop.f32.mrb[0].mxu0
        %v561 = vadd.f32 0.0, %v560
        %v562 = vpop.f32.mrb[0].mxu0
        %563 = vmatprep.mubr.bf16.mxu0 0
        %564 = vmatmul.mubr.bf16.gmra.mrb[0].mxu0 %v424
        %v565 = vpop.f32.mrb[0].mxu0
        %v566 = vadd.f32 0.0, %v565
        %v567 = vpop.f32.mrb[0].mxu0
        %v568 = vpop.f32.mrb[0].mxu0
        %v569 = vadd.f32 0.0, %v568
        %v570 = vpop.f32.mrb[0].mxu0
        %571 = vmatprep.mubr.bf16.mxu0 0
        %572 = vmatmul.mubr.bf16.gmra.mrb[0].mxu0 %v427
        %v573 = vpop.f32.mrb[0].mxu0
        %v574 = vadd.f32 0.0, %v573
        %v575 = vpop.f32.mrb[0].mxu0
        %v576 = vpop.f32.mrb[0].mxu0
        %v577 = vadd.f32 0.0, %v576
        %v578 = vpop.f32.mrb[0].mxu0
        %579 = vmatprep.mubr.bf16.mxu0 0
        %580 = vmatmul.mubr.bf16.gmra.mrb[0].mxu0 %v430
        %v581 = vpop.f32.mrb[0].mxu0
        %v582 = vadd.f32 0.0, %v581
        %v583 = vpop.f32.mrb[0].mxu0
        %v584 = vpop.f32.mrb[0].mxu0
        %v585 = vadd.f32 0.0, %v584
        %v586 = vpop.f32.mrb[0].mxu0
        %587 = vmatprep.mubr.bf16.mxu0 0
        %588 = vmatmul.mubr.bf16.gmra.mrb[0].mxu0 %v433
        %v589 = vpop.f32.mrb[0].mxu0
        %v590 = vadd.f32 0.0, %v589
        %v591 = vpop.f32.mrb[0].mxu0
        %v592 = vpop.f32.mrb[0].mxu0
        %v593 = vadd.f32 0.0, %v592
        %v594 = vpop.f32.mrb[0].mxu0
        %595 = vmatprep.mubr.bf16.mxu0 0
        %596 = vmatmul.mubr.bf16.gmra.mrb[0].mxu0 %v436
        %v597 = vpop.f32.mrb[0].mxu0
        %v598 = vadd.f32 0.0, %v597
        %v599 = vpop.f32.mrb[0].mxu0
        %v600 = vpop.f32.mrb[0].mxu0
        %v601 = vadd.f32 0.0, %v600
        %v602 = vpop.f32.mrb[0].mxu0
        %603 = vmatprep.mubr.bf16.mxu0 0
        %604 = vmatmul.mubr.bf16.gmra.mrb[0].mxu0 %v439
        %v605 = vpop.f32.mrb[0].mxu0
        %v606 = vadd.f32 0.0, %v605
        %v607 = vpop.f32.mrb[0].mxu0
        %v608 = vpop.f32.mrb[0].mxu0
        %v609 = vadd.f32 0.0, %v608
        %v610 = vpop.f32.mrb[0].mxu0
        %611 = vmatprep.mubr.bf16.mxu0 0
        %612 = vmatmul.mubr.bf16.gmra.mrb[0].mxu0 %v442
        %v613 = vpop.f32.mrb[0].mxu0
        %v614 = vadd.f32 0.0, %v613
        %v615 = vpop.f32.mrb[0].mxu0
        %v616 = vpop.f32.mrb[0].mxu0
        %v617 = vadd.f32 0.0, %v616
        %v618 = vpop.f32.mrb[0].mxu0
        %619 = vmatprep.mubr.bf16.mxu0 0
        %620 = vmatmul.mubr.bf16.gmra.mrb[0].mxu0 %v445
        %v621 = vpop.f32.mrb[0].mxu0
        %v622 = vadd.f32 0.0, %v621
        %v623 = vpop.f32.mrb[0].mxu0
        %v624 = vpop.f32.mrb[0].mxu0
        %v625 = vadd.f32 0.0, %v624
        %v626 = vpop.f32.mrb[0].mxu0
        %627 = vmatprep.mubr.bf16.mxu0 0
        %628 = vmatmul.mubr.bf16.gmra.mrb[0].mxu0 %v448
        %v629 = vpop.f32.mrb[0].mxu0
        %v630 = vadd.f32 0.0, %v629
        %v631 = vpop.f32.mrb[0].mxu0
        %v632 = vpop.f32.mrb[0].mxu0
        %v633 = vadd.f32 0.0, %v632
        %v634 = vpop.f32.mrb[0].mxu0
        %635 = vmatprep.mubr.bf16.mxu0 0
        %636 = vmatmul.mubr.bf16.gmra.mrb[0].mxu0 %v451
        %v637 = vpop.f32.mrb[0].mxu0
        %v638 = vadd.f32 0.0, %v637
        %v639 = vpop.f32.mrb[0].mxu0
        %v640 = vpop.f32.mrb[0].mxu0
        %v641 = vadd.f32 0.0, %v640
        %v642 = vpop.f32.mrb[0].mxu0
        %643 = vmatprep.mubr.bf16.mxu0 0
        %644 = vmatmul.mubr.bf16.gmra.mrb[0].mxu0 %v454
        %v645 = vpop.f32.mrb[0].mxu0
        %v646 = vadd.f32 0.0, %v645
        %v647 = vpop.f32.mrb[0].mxu0
        %v648 = vpop.f32.mrb[0].mxu0
        %v649 = vadd.f32 0.0, %v648
        %v650 = vpop.f32.mrb[0].mxu0
        %651 = vmatprep.mubr.bf16.mxu0 0
        %652 = vmatmul.mubr.bf16.gmra.mrb[0].mxu0 %v457
        %v653 = vpop.f32.mrb[0].mxu0
        %v654 = vadd.f32 0.0, %v653
        %v655 = vpop.f32.mrb[0].mxu0
        %v656 = vpop.f32.mrb[0].mxu0
        %v657 = vadd.f32 0.0, %v656
        %v658 = vpop.f32.mrb[0].mxu0
        %659 = vmatprep.mubr.bf16.mxu0 0
        %660 = vmatmul.mubr.bf16.gmra.mrb[0].mxu0 %v460
        %v661 = vpop.f32.mrb[0].mxu0
        %v662 = vadd.f32 0.0, %v661
        %v663 = vpop.f32.mrb[0].mxu0
        %v664 = vpop.f32.mrb[0].mxu0
        %v665 = vadd.f32 0.0, %v664
        %v666 = vpop.f32.mrb[0].mxu0
        %667 = vmatprep.mubr.bf16.mxu0 0
        %668 = vmatmul.mubr.bf16.gmra.mrb[0].mxu0 %v463
        %v669 = vpop.f32.mrb[0].mxu0
        %v670 = vadd.f32 0.0, %v669
        %v671 = vpop.f32.mrb[0].mxu0
        %v672 = vpop.f32.mrb[0].mxu0
        %v673 = vadd.f32 0.0, %v672
        %v674 = vpop.f32.mrb[0].mxu0
        %675 = vmatprep.mubr.bf16.mxu0 0
        %676 = vmatmul.mubr.bf16.gmra.mrb[0].mxu0 %v466
        %v677 = vpop.f32.mrb[0].mxu0
        %v678 = vadd.f32 0.0, %v677
        %v679 = vpop.f32.mrb[0].mxu0
        %v680 = vpop.f32.mrb[0].mxu0
        %v681 = vadd.f32 0.0, %v680
        %v682 = vpop.f32.mrb[0].mxu0
        %683 = vmatprep.mubr.bf16.mxu0 0
        %684 = vmatmul.mubr.bf16.gmra.mrb[0].mxu0 %v469
        %v685 = vpop.f32.mrb[0].mxu0
        %v686 = vadd.f32 0.0, %v685
        %v687 = vpop.f32.mrb[0].mxu0
        %v688 = vpop.f32.mrb[0].mxu0
        %v689 = vadd.f32 0.0, %v688
        %v690 = vpop.f32.mrb[0].mxu0
        %691 = vmatprep.mubr.bf16.mxu0 0
        %692 = vmatmul.mubr.bf16.gmra.mrb[0].mxu0 %v472
        %v693 = vpop.f32.mrb[0].mxu0
        %v694 = vadd.f32 0.0, %v693
        %v695 = vpop.f32.mrb[0].mxu0
        %v696 = vpop.f32.mrb[0].mxu0
        %v697 = vadd.f32 0.0, %v696
        %v698 = vpop.f32.mrb[0].mxu0
        %699 = vmatprep.mubr.bf16.mxu0 0
        %700 = vmatmul.mubr.bf16.gmra.mrb[0].mxu0 %v475
        %v701 = vpop.f32.mrb[0].mxu0
        %v702 = vadd.f32 0.0, %v701
        %v703 = vpop.f32.mrb[0].mxu0
        %v704 = vpop.f32.mrb[0].mxu0
        %v705 = vadd.f32 0.0, %v704
        %v706 = vpop.f32.mrb[0].mxu0
        %707 = vmatprep.mubr.bf16.mxu0 0
        %708 = vmatmul.mubr.bf16.gmra.mrb[0].mxu0 %v478
        %v709 = vpop.f32.mrb[0].mxu0
        %v710 = vadd.f32 0.0, %v709
        %v711 = vpop.f32.mrb[0].mxu0
        %v712 = vpop.f32.mrb[0].mxu0
        %v713 = vadd.f32 0.0, %v712
        %v714 = vpop.f32.mrb[0].mxu0
        %715 = vmatprep.mubr.bf16.mxu0 0
        %716 = vmatmul.mubr.bf16.gmra.mrb[0].mxu0 %v481
        %v717 = vpop.f32.mrb[0].mxu0
        %v718 = vadd.f32 0.0, %v717
        %v719 = vpop.f32.mrb[0].mxu0
        %v720 = vpop.f32.mrb[0].mxu0
        %v721 = vadd.f32 0.0, %v720
        %v722 = vpop.f32.mrb[0].mxu0
        %723 = vmatprep.mubr.bf16.mxu0 0
        %724 = vmatmul.mubr.bf16.gmra.mrb[0].mxu0 %v484
        %v725 = vpop.f32.mrb[0].mxu0
        %v726 = vadd.f32 0.0, %v725
        %v727 = vpop.f32.mrb[0].mxu0
        %v728 = vpop.f32.mrb[0].mxu0
        %v729 = vadd.f32 0.0, %v728
        %v730 = vpop.f32.mrb[0].mxu0
        %731 = vmatprep.mubr.bf16.mxu0 0
        %732 = vmatmul.mubr.bf16.gmra.mrb[0].mxu0 %v487
        %v733 = vpop.f32.mrb[0].mxu0
        %v734 = vadd.f32 0.0, %v733
        %v735 = vpop.f32.mrb[0].mxu0
        %v736 = vpop.f32.mrb[0].mxu0
        %v737 = vadd.f32 0.0, %v736
        %v738 = vpop.f32.mrb[0].mxu0
        %739 = vmatprep.mubr.bf16.mxu0 0
        %740 = vmatmul.mubr.bf16.gmra.mrb[0].mxu0 %v490
        %v741 = vpop.f32.mrb[0].mxu0
        %v742 = vadd.f32 0.0, %v741
        %v743 = vpop.f32.mrb[0].mxu0
        %v744 = vpop.f32.mrb[0].mxu0
        %v745 = vadd.f32 0.0, %v744
        %v746 = vpop.f32.mrb[0].mxu0
        %747 = vmatprep.mubr.bf16.mxu0 0
        %748 = vmatmul.mubr.bf16.gmra.mrb[0].mxu0 %v493
        %v749 = vpop.f32.mrb[0].mxu0
        %v750 = vadd.f32 0.0, %v749
        %v751 = vpop.f32.mrb[0].mxu0
        %v752 = vpop.f32.mrb[0].mxu0
        %v753 = vadd.f32 0.0, %v752
        %v754 = vpop.f32.mrb[0].mxu0
        %755 = vmatprep.mubr.bf16.mxu0 0
        %756 = vmatmul.mubr.bf16.gmra.mrb[0].mxu0 %v496
        %v757 = vpop.f32.mrb[0].mxu0
        %v758 = vadd.f32 0.0, %v757
        %v759 = vpop.f32.mrb[0].mxu0
        %v760 = vpop.f32.mrb[0].mxu0
        %v761 = vadd.f32 0.0, %v760
        %v762 = vpop.f32.mrb[0].mxu0
        %763 = vmatprep.mubr.bf16.mxu0 0
        %764 = vmatmul.mubr.bf16.gmra.mrb[0].mxu0 %v499
        %v765 = vpop.f32.mrb[0].mxu0
        %v766 = vadd.f32 0.0, %v765
        %v767 = vpop.f32.mrb[0].mxu0
        %v768 = vpop.f32.mrb[0].mxu0
        %v769 = vadd.f32 0.0, %v768
        %v770 = vpop.f32.mrb[0].mxu0
        %771 = vmatprep.mubr.bf16.mxu0 0
        %772 = vmatmul.mubr.bf16.gmra.mrb[0].mxu0 %v502
        %v773 = vpop.f32.mrb[0].mxu0
        %v774 = vadd.f32 0.0, %v773
        %v775 = vpop.f32.mrb[0].mxu0
        %v776 = vpop.f32.mrb[0].mxu0
        %v777 = vadd.f32 0.0, %v776
        %v778 = vpop.f32.mrb[0].mxu0
        %779 = vmatprep.mubr.bf16.mxu0 0
        %780 = vmatmul.mubr.bf16.gmra.mrb[0].mxu0 %v505
        %v781 = vpop.f32.mrb[0].mxu0
        %v782 = vadd.f32 0.0, %v781
        %v783 = vpop.f32.mrb[0].mxu0
        %v784 = vpop.f32.mrb[0].mxu0
        %v785 = vadd.f32 0.0, %v784
        %v786 = vpop.f32.mrb[0].mxu0
        %787 = vmatprep.mubr.bf16.mxu0 0
        %788 = vmatmul.mubr.bf16.gmra.mrb[0].mxu0 %v508
        %v789 = vpop.f32.mrb[0].mxu0
        %v790 = vadd.f32 0.0, %v789
        %v791 = vpop.f32.mrb[0].mxu0
        %v792 = vpop.f32.mrb[0].mxu0
        %v793 = vadd.f32 0.0, %v792
        %v794 = vpop.f32.mrb[0].mxu0
        %795 = vmatprep.mubr.bf16.mxu0 0
        %796 = vmatmul.mubr.bf16.gmra.mrb[0].mxu0 %v511
        %v797 = vpop.f32.mrb[0].mxu0
        %v798 = vadd.f32 0.0, %v797
        %v799 = vpop.f32.mrb[0].mxu0
        %v800 = vpop.f32.mrb[0].mxu0
        %v801 = vadd.f32 0.0, %v800
        %v802 = vpop.f32.mrb[0].mxu0
        %803 = vmatprep.mubr.bf16.mxu0 0
        %804 = vmatmul.mubr.bf16.gmra.mrb[0].mxu0 %v514
        %v805 = vpop.f32.mrb[0].mxu0
        %v806 = vadd.f32 0.0, %v805
        %v807 = vpop.f32.mrb[0].mxu0
        %v808 = vpop.f32.mrb[0].mxu0
        %v809 = vadd.f32 0.0, %v808
        %v810 = vpop.f32.mrb[0].mxu0
        %811 = vdwg.mxu0
        %vm812 = vcmask 261120
        %813 = vst.msk [vmem:[%s171] sm:$0xff] %vm812, %v558
        %814 = vst.msk [vmem:[%s171 + $0x8] sm:$0xff] %vm812, %v561
        %815 = vst.msk [vmem:[%s171 + $0x10] sm:$0xff] %vm812, %v566
        %816 = vst.msk [vmem:[%s171 + $0x18] sm:$0xff] %vm812, %v569
        %817 = vst.msk [vmem:[%s171 + $0x20] sm:$0xff] %vm812, %v574
        %818 = vst.msk [vmem:[%s171 + $0x28] sm:$0xff] %vm812, %v577
        %819 = vst.msk [vmem:[%s171 + $0x30] sm:$0xff] %vm812, %v582
        %820 = vst.msk [vmem:[%s171 + $0x38] sm:$0xff] %vm812, %v585
        %821 = vst.msk [vmem:[%s171 + $0x40] sm:$0xff] %vm812, %v590
        %822 = vst.msk [vmem:[%s171 + $0x48] sm:$0xff] %vm812, %v593
        %823 = vst.msk [vmem:[%s171 + $0x50] sm:$0xff] %vm812, %v598
        %824 = vst.msk [vmem:[%s171 + $0x58] sm:$0xff] %vm812, %v601
        %825 = vst.msk [vmem:[%s171 + $0x60] sm:$0xff] %vm812, %v606
        %826 = vst.msk [vmem:[%s171 + $0x68] sm:$0xff] %vm812, %v609
        %827 = vst.msk [vmem:[%s171 + $0x70] sm:$0xff] %vm812, %v614
        %828 = vst.msk [vmem:[%s171 + $0x78] sm:$0xff] %vm812, %v617
        %829 = vst.msk [vmem:[%s171 + $0x80] sm:$0xff] %vm812, %v622
        %830 = vst.msk [vmem:[%s171 + $0x88] sm:$0xff] %vm812, %v625
        %831 = vst.msk [vmem:[%s171 + $0x90] sm:$0xff] %vm812, %v630
        %832 = vst.msk [vmem:[%s171 + $0x98] sm:$0xff] %vm812, %v633
        %833 = vst.msk [vmem:[%s171 + $0xa0] sm:$0xff] %vm812, %v638
        %834 = vst.msk [vmem:[%s171 + $0xa8] sm:$0xff] %vm812, %v641
        %835 = vst.msk [vmem:[%s171 + $0xb0] sm:$0xff] %vm812, %v646
        %836 = vst.msk [vmem:[%s171 + $0xb8] sm:$0xff] %vm812, %v649
        %837 = vst.msk [vmem:[%s171 + $0xc0] sm:$0xff] %vm812, %v654
        %838 = vst.msk [vmem:[%s171 + $0xc8] sm:$0xff] %vm812, %v657
        %839 = vst.msk [vmem:[%s171 + $0xd0] sm:$0xff] %vm812, %v662
        %840 = vst.msk [vmem:[%s171 + $0xd8] sm:$0xff] %vm812, %v665
        %841 = vst.msk [vmem:[%s171 + $0xe0] sm:$0xff] %vm812, %v670
        %842 = vst.msk [vmem:[%s171 + $0xe8] sm:$0xff] %vm812, %v673
        %843 = vst.msk [vmem:[%s171 + $0xf0] sm:$0xff] %vm812, %v678
        %844 = vst.msk [vmem:[%s171 + $0xf8] sm:$0xff] %vm812, %v681
        %845 = vst.msk [vmem:[%s171 + $0x100] sm:$0xff] %vm812, %v686
        %846 = vst.msk [vmem:[%s171 + $0x108] sm:$0xff] %vm812, %v689
        %847 = vst.msk [vmem:[%s171 + $0x110] sm:$0xff] %vm812, %v694
        %848 = vst.msk [vmem:[%s171 + $0x118] sm:$0xff] %vm812, %v697
        %849 = vst.msk [vmem:[%s171 + $0x120] sm:$0xff] %vm812, %v702
        %850 = vst.msk [vmem:[%s171 + $0x128] sm:$0xff] %vm812, %v705
        %851 = vst.msk [vmem:[%s171 + $0x130] sm:$0xff] %vm812, %v710
        %852 = vst.msk [vmem:[%s171 + $0x138] sm:$0xff] %vm812, %v713
        %853 = vst.msk [vmem:[%s171 + $0x140] sm:$0xff] %vm812, %v718
        %854 = vst.msk [vmem:[%s171 + $0x148] sm:$0xff] %vm812, %v721
        %855 = vst.msk [vmem:[%s171 + $0x150] sm:$0xff] %vm812, %v726
        %856 = vst.msk [vmem:[%s171 + $0x158] sm:$0xff] %vm812, %v729
        %857 = vst.msk [vmem:[%s171 + $0x160] sm:$0xff] %vm812, %v734
        %858 = vst.msk [vmem:[%s171 + $0x168] sm:$0xff] %vm812, %v737
        %859 = vst.msk [vmem:[%s171 + $0x170] sm:$0xff] %vm812, %v742
        %860 = vst.msk [vmem:[%s171 + $0x178] sm:$0xff] %vm812, %v745
        %861 = vst.msk [vmem:[%s171 + $0x180] sm:$0xff] %vm812, %v750
        %862 = vst.msk [vmem:[%s171 + $0x188] sm:$0xff] %vm812, %v753
        %863 = vst.msk [vmem:[%s171 + $0x190] sm:$0xff] %vm812, %v758
        %864 = vst.msk [vmem:[%s171 + $0x198] sm:$0xff] %vm812, %v761
        %865 = vst.msk [vmem:[%s171 + $0x1a0] sm:$0xff] %vm812, %v766
        %866 = vst.msk [vmem:[%s171 + $0x1a8] sm:$0xff] %vm812, %v769
        %867 = vst.msk [vmem:[%s171 + $0x1b0] sm:$0xff] %vm812, %v774
        %868 = vst.msk [vmem:[%s171 + $0x1b8] sm:$0xff] %vm812, %v777
        %869 = vst.msk [vmem:[%s171 + $0x1c0] sm:$0xff] %vm812, %v782
        %870 = vst.msk [vmem:[%s171 + $0x1c8] sm:$0xff] %vm812, %v785
        %871 = vst.msk [vmem:[%s171 + $0x1d0] sm:$0xff] %vm812, %v790
        %872 = vst.msk [vmem:[%s171 + $0x1d8] sm:$0xff] %vm812, %v793
        %873 = vst.msk [vmem:[%s171 + $0x1e0] sm:$0xff] %vm812, %v798
        %874 = vst.msk [vmem:[%s171 + $0x1e8] sm:$0xff] %vm812, %v801
        %875 = vst.msk [vmem:[%s171 + $0x1f0] sm:$0xff] %vm812, %v806
        %876 = vst.msk [vmem:[%s171 + $0x1f8] sm:$0xff] %vm812, %v809
        %v877 = vsel %vm812, %v558, 0.0
        %v878 = vsel %vm812, %v561, 0.0
        %v879 = vadd.f32 %v877, %v878
        %v880 = vsel %vm812, %v566, 0.0
        %v881 = vadd.f32 %v879, %v880
        %v882 = vsel %vm812, %v569, 0.0
        %v883 = vadd.f32 %v881, %v882
        %v884 = vsel %vm812, %v574, 0.0
        %v885 = vadd.f32 %v883, %v884
        %v886 = vsel %vm812, %v577, 0.0
        %v887 = vadd.f32 %v885, %v886
        %v888 = vsel %vm812, %v582, 0.0
        %v889 = vadd.f32 %v887, %v888
        %v890 = vsel %vm812, %v585, 0.0
        %v891 = vadd.f32 %v889, %v890
        %v892 = vsel %vm812, %v590, 0.0
        %v893 = vadd.f32 %v891, %v892
        %v894 = vsel %vm812, %v593, 0.0
        %v895 = vadd.f32 %v893, %v894
        %v896 = vsel %vm812, %v598, 0.0
        %v897 = vadd.f32 %v895, %v896
        %v898 = vsel %vm812, %v601, 0.0
        %v899 = vadd.f32 %v897, %v898
        %v900 = vsel %vm812, %v606, 0.0
        %v901 = vadd.f32 %v899, %v900
        %v902 = vsel %vm812, %v609, 0.0
        %v903 = vadd.f32 %v901, %v902
        %v904 = vsel %vm812, %v614, 0.0
        %v905 = vadd.f32 %v903, %v904
        %v906 = vsel %vm812, %v617, 0.0
        %v907 = vadd.f32 %v905, %v906
        %v908 = vsel %vm812, %v622, 0.0
        %v909 = vadd.f32 %v907, %v908
        %v910 = vsel %vm812, %v625, 0.0
        %v911 = vadd.f32 %v909, %v910
        %v912 = vsel %vm812, %v630, 0.0
        %v913 = vadd.f32 %v911, %v912
        %v914 = vsel %vm812, %v633, 0.0
        %v915 = vadd.f32 %v913, %v914
        %v916 = vsel %vm812, %v638, 0.0
        %v917 = vadd.f32 %v915, %v916
        %v918 = vsel %vm812, %v641, 0.0
        %v919 = vadd.f32 %v917, %v918
        %v920 = vsel %vm812, %v646, 0.0
        %v921 = vadd.f32 %v919, %v920
        %v922 = vsel %vm812, %v649, 0.0
        %v923 = vadd.f32 %v921, %v922
        %v924 = vsel %vm812, %v654, 0.0
        %v925 = vadd.f32 %v923, %v924
        %v926 = vsel %vm812, %v657, 0.0
        %v927 = vadd.f32 %v925, %v926
        %v928 = vsel %vm812, %v662, 0.0
        %v929 = vadd.f32 %v927, %v928
        %v930 = vsel %vm812, %v665, 0.0
        %v931 = vadd.f32 %v929, %v930
        %v932 = vsel %vm812, %v670, 0.0
        %v933 = vadd.f32 %v931, %v932
        %v934 = vsel %vm812, %v673, 0.0
        %v935 = vadd.f32 %v933, %v934
        %v936 = vsel %vm812, %v678, 0.0
        %v937 = vadd.f32 %v935, %v936
        %v938 = vsel %vm812, %v681, 0.0
        %v939 = vadd.f32 %v937, %v938
        %v940 = vsel %vm812, %v686, 0.0
        %v941 = vadd.f32 %v939, %v940
        %v942 = vsel %vm812, %v689, 0.0
        %v943 = vadd.f32 %v941, %v942
        %v944 = vsel %vm812, %v694, 0.0
        %v945 = vadd.f32 %v943, %v944
        %v946 = vsel %vm812, %v697, 0.0
        %v947 = vadd.f32 %v945, %v946
        %v948 = vsel %vm812, %v702, 0.0
        %v949 = vadd.f32 %v947, %v948
        %v950 = vsel %vm812, %v705, 0.0
        %v951 = vadd.f32 %v949, %v950
        %v952 = vsel %vm812, %v710, 0.0
        %v953 = vadd.f32 %v951, %v952
        %v954 = vsel %vm812, %v713, 0.0
        %v955 = vadd.f32 %v953, %v954
        %v956 = vsel %vm812, %v718, 0.0
        %v957 = vadd.f32 %v955, %v956
        %v958 = vsel %vm812, %v721, 0.0
        %v959 = vadd.f32 %v957, %v958
        %v960 = vsel %vm812, %v726, 0.0
        %v961 = vadd.f32 %v959, %v960
        %v962 = vsel %vm812, %v729, 0.0
        %v963 = vadd.f32 %v961, %v962
        %v964 = vsel %vm812, %v734, 0.0
        %v965 = vadd.f32 %v963, %v964
        %v966 = vsel %vm812, %v737, 0.0
        %v967 = vadd.f32 %v965, %v966
        %v968 = vsel %vm812, %v742, 0.0
        %v969 = vadd.f32 %v967, %v968
        %v970 = vsel %vm812, %v745, 0.0
        %v971 = vadd.f32 %v969, %v970
        %v972 = vsel %vm812, %v750, 0.0
        %v973 = vadd.f32 %v971, %v972
        %v974 = vsel %vm812, %v753, 0.0
        %v975 = vadd.f32 %v973, %v974
        %v976 = vsel %vm812, %v758, 0.0
        %v977 = vadd.f32 %v975, %v976
        %v978 = vsel %vm812, %v761, 0.0
        %v979 = vadd.f32 %v977, %v978
        %v980 = vsel %vm812, %v766, 0.0
        %v981 = vadd.f32 %v979, %v980
        %v982 = vsel %vm812, %v769, 0.0
        %v983 = vadd.f32 %v981, %v982
        %v984 = vsel %vm812, %v774, 0.0
        %v985 = vadd.f32 %v983, %v984
        %v986 = vsel %vm812, %v777, 0.0
        %v987 = vadd.f32 %v985, %v986
        %v988 = vsel %vm812, %v782, 0.0
        %v989 = vadd.f32 %v987, %v988
        %v990 = vsel %vm812, %v785, 0.0
        %v991 = vadd.f32 %v989, %v990
        %v992 = vsel %vm812, %v790, 0.0
        %v993 = vadd.f32 %v991, %v992
        %v994 = vsel %vm812, %v793, 0.0
        %v995 = vadd.f32 %v993, %v994
        %v996 = vsel %vm812, %v798, 0.0
        %v997 = vadd.f32 %v995, %v996
        %v998 = vsel %vm812, %v801, 0.0
        %v999 = vadd.f32 %v997, %v998
        %v1000 = vsel %vm812, %v806, 0.0
        %v1001 = vadd.f32 %v999, %v1000
        %v1002 = vsel %vm812, %v809, 0.0
        %v1003 = vadd.f32 %v1001, %v1002
        %v1004 = vrot.slane %v1003, 4
        %v1005 = vadd.f32 %v1003, %v1004
        %v1006 = vrot.slane %v1005, 2
        %v1007 = vadd.f32 %v1005, %v1006
        %v1008 = vrot.slane %v1007, 1
        %v1009 = vadd.f32 %v1007, %v1008
        %v1010 = vmul.f32 %v558, %v558
        %v1011 = vmul.f32 %v561, %v561
        %v1012 = vmul.f32 %v566, %v566
        %v1013 = vmul.f32 %v569, %v569
        %v1014 = vmul.f32 %v574, %v574
        %v1015 = vmul.f32 %v577, %v577
        %v1016 = vmul.f32 %v582, %v582
        %v1017 = vmul.f32 %v585, %v585
        %v1018 = vmul.f32 %v590, %v590
        %v1019 = vmul.f32 %v593, %v593
        %v1020 = vmul.f32 %v598, %v598
        %v1021 = vmul.f32 %v601, %v601
        %v1022 = vmul.f32 %v606, %v606
        %v1023 = vmul.f32 %v609, %v609
        %v1024 = vmul.f32 %v614, %v614
        %v1025 = vmul.f32 %v617, %v617
        %v1026 = vmul.f32 %v622, %v622
        %v1027 = vmul.f32 %v625, %v625
        %v1028 = vmul.f32 %v630, %v630
        %v1029 = vmul.f32 %v633, %v633
        %v1030 = vmul.f32 %v638, %v638
        %v1031 = vmul.f32 %v641, %v641
        %v1032 = vmul.f32 %v646, %v646
        %v1033 = vmul.f32 %v649, %v649
        %v1034 = vmul.f32 %v654, %v654
        %v1035 = vmul.f32 %v657, %v657
        %v1036 = vmul.f32 %v662, %v662
        %v1037 = vmul.f32 %v665, %v665
        %v1038 = vmul.f32 %v670, %v670
        %v1039 = vmul.f32 %v673, %v673
        %v1040 = vmul.f32 %v678, %v678
        %v1041 = vmul.f32 %v681, %v681
        %v1042 = vmul.f32 %v686, %v686
        %v1043 = vmul.f32 %v689, %v689
        %v1044 = vmul.f32 %v694, %v694
        %v1045 = vmul.f32 %v697, %v697
        %v1046 = vmul.f32 %v702, %v702
        %v1047 = vmul.f32 %v705, %v705
        %v1048 = vmul.f32 %v710, %v710
        %v1049 = vmul.f32 %v713, %v713
        %v1050 = vmul.f32 %v718, %v718
        %v1051 = vmul.f32 %v721, %v721
        %v1052 = vmul.f32 %v726, %v726
        %v1053 = vmul.f32 %v729, %v729
        %v1054 = vmul.f32 %v734, %v734
        %v1055 = vmul.f32 %v737, %v737
        %v1056 = vmul.f32 %v742, %v742
        %v1057 = vmul.f32 %v745, %v745
        %v1058 = vmul.f32 %v750, %v750
        %v1059 = vmul.f32 %v753, %v753
        %v1060 = vmul.f32 %v758, %v758
        %v1061 = vmul.f32 %v761, %v761
        %v1062 = vmul.f32 %v766, %v766
        %v1063 = vmul.f32 %v769, %v769
        %v1064 = vmul.f32 %v774, %v774
        %v1065 = vmul.f32 %v777, %v777
        %v1066 = vmul.f32 %v782, %v782
        %v1067 = vmul.f32 %v785, %v785
        %v1068 = vmul.f32 %v790, %v790
        %v1069 = vmul.f32 %v793, %v793
        %v1070 = vmul.f32 %v798, %v798
        %v1071 = vmul.f32 %v801, %v801
        %v1072 = vmul.f32 %v806, %v806
        %v1073 = vmul.f32 %v809, %v809
        %v1074 = vsel %vm812, %v1010, 0.0
        %v1075 = vsel %vm812, %v1011, 0.0
        %v1076 = vadd.f32 %v1074, %v1075
        %v1077 = vsel %vm812, %v1012, 0.0
        %v1078 = vadd.f32 %v1076, %v1077
        %v1079 = vsel %vm812, %v1013, 0.0
        %v1080 = vadd.f32 %v1078, %v1079
        %v1081 = vsel %vm812, %v1014, 0.0
        %v1082 = vadd.f32 %v1080, %v1081
        %v1083 = vsel %vm812, %v1015, 0.0
        %v1084 = vadd.f32 %v1082, %v1083
        %v1085 = vsel %vm812, %v1016, 0.0
        %v1086 = vadd.f32 %v1084, %v1085
        %v1087 = vsel %vm812, %v1017, 0.0
        %v1088 = vadd.f32 %v1086, %v1087
        %v1089 = vsel %vm812, %v1018, 0.0
        %v1090 = vadd.f32 %v1088, %v1089
        %v1091 = vsel %vm812, %v1019, 0.0
        %v1092 = vadd.f32 %v1090, %v1091
        %v1093 = vsel %vm812, %v1020, 0.0
        %v1094 = vadd.f32 %v1092, %v1093
        %v1095 = vsel %vm812, %v1021, 0.0
        %v1096 = vadd.f32 %v1094, %v1095
        %v1097 = vsel %vm812, %v1022, 0.0
        %v1098 = vadd.f32 %v1096, %v1097
        %v1099 = vsel %vm812, %v1023, 0.0
        %v1100 = vadd.f32 %v1098, %v1099
        %v1101 = vsel %vm812, %v1024, 0.0
        %v1102 = vadd.f32 %v1100, %v1101
        %v1103 = vsel %vm812, %v1025, 0.0
        %v1104 = vadd.f32 %v1102, %v1103
        %v1105 = vsel %vm812, %v1026, 0.0
        %v1106 = vadd.f32 %v1104, %v1105
        %v1107 = vsel %vm812, %v1027, 0.0
        %v1108 = vadd.f32 %v1106, %v1107
        %v1109 = vsel %vm812, %v1028, 0.0
        %v1110 = vadd.f32 %v1108, %v1109
        %v1111 = vsel %vm812, %v1029, 0.0
        %v1112 = vadd.f32 %v1110, %v1111
        %v1113 = vsel %vm812, %v1030, 0.0
        %v1114 = vadd.f32 %v1112, %v1113
        %v1115 = vsel %vm812, %v1031, 0.0
        %v1116 = vadd.f32 %v1114, %v1115
        %v1117 = vsel %vm812, %v1032, 0.0
        %v1118 = vadd.f32 %v1116, %v1117
        %v1119 = vsel %vm812, %v1033, 0.0
        %v1120 = vadd.f32 %v1118, %v1119
        %v1121 = vsel %vm812, %v1034, 0.0
        %v1122 = vadd.f32 %v1120, %v1121
        %v1123 = vsel %vm812, %v1035, 0.0
        %v1124 = vadd.f32 %v1122, %v1123
        %v1125 = vsel %vm812, %v1036, 0.0
        %v1126 = vadd.f32 %v1124, %v1125
        %v1127 = vsel %vm812, %v1037, 0.0
        %v1128 = vadd.f32 %v1126, %v1127
        %v1129 = vsel %vm812, %v1038, 0.0
        %v1130 = vadd.f32 %v1128, %v1129
        %v1131 = vsel %vm812, %v1039, 0.0
        %v1132 = vadd.f32 %v1130, %v1131
        %v1133 = vsel %vm812, %v1040, 0.0
        %v1134 = vadd.f32 %v1132, %v1133
        %v1135 = vsel %vm812, %v1041, 0.0
        %v1136 = vadd.f32 %v1134, %v1135
        %v1137 = vsel %vm812, %v1042, 0.0
        %v1138 = vadd.f32 %v1136, %v1137
        %v1139 = vsel %vm812, %v1043, 0.0
        %v1140 = vadd.f32 %v1138, %v1139
        %v1141 = vsel %vm812, %v1044, 0.0
        %v1142 = vadd.f32 %v1140, %v1141
        %v1143 = vsel %vm812, %v1045, 0.0
        %v1144 = vadd.f32 %v1142, %v1143
        %v1145 = vsel %vm812, %v1046, 0.0
        %v1146 = vadd.f32 %v1144, %v1145
        %v1147 = vsel %vm812, %v1047, 0.0
        %v1148 = vadd.f32 %v1146, %v1147
        %v1149 = vsel %vm812, %v1048, 0.0
        %v1150 = vadd.f32 %v1148, %v1149
        %v1151 = vsel %vm812, %v1049, 0.0
        %v1152 = vadd.f32 %v1150, %v1151
        %v1153 = vsel %vm812, %v1050, 0.0
        %v1154 = vadd.f32 %v1152, %v1153
        %v1155 = vsel %vm812, %v1051, 0.0
        %v1156 = vadd.f32 %v1154, %v1155
        %v1157 = vsel %vm812, %v1052, 0.0
        %v1158 = vadd.f32 %v1156, %v1157
        %v1159 = vsel %vm812, %v1053, 0.0
        %v1160 = vadd.f32 %v1158, %v1159
        %v1161 = vsel %vm812, %v1054, 0.0
        %v1162 = vadd.f32 %v1160, %v1161
        %v1163 = vsel %vm812, %v1055, 0.0
        %v1164 = vadd.f32 %v1162, %v1163
        %v1165 = vsel %vm812, %v1056, 0.0
        %v1166 = vadd.f32 %v1164, %v1165
        %v1167 = vsel %vm812, %v1057, 0.0
        %v1168 = vadd.f32 %v1166, %v1167
        %v1169 = vsel %vm812, %v1058, 0.0
        %v1170 = vadd.f32 %v1168, %v1169
        %v1171 = vsel %vm812, %v1059, 0.0
        %v1172 = vadd.f32 %v1170, %v1171
        %v1173 = vsel %vm812, %v1060, 0.0
        %v1174 = vadd.f32 %v1172, %v1173
        %v1175 = vsel %vm812, %v1061, 0.0
        %v1176 = vadd.f32 %v1174, %v1175
        %v1177 = vsel %vm812, %v1062, 0.0
        %v1178 = vadd.f32 %v1176, %v1177
        %v1179 = vsel %vm812, %v1063, 0.0
        %v1180 = vadd.f32 %v1178, %v1179
        %v1181 = vsel %vm812, %v1064, 0.0
        %v1182 = vadd.f32 %v1180, %v1181
        %v1183 = vsel %vm812, %v1065, 0.0
        %v1184 = vadd.f32 %v1182, %v1183
        %v1185 = vsel %vm812, %v1066, 0.0
        %v1186 = vadd.f32 %v1184, %v1185
        %v1187 = vsel %vm812, %v1067, 0.0
        %v1188 = vadd.f32 %v1186, %v1187
        %v1189 = vsel %vm812, %v1068, 0.0
        %v1190 = vadd.f32 %v1188, %v1189
        %v1191 = vsel %vm812, %v1069, 0.0
        %v1192 = vadd.f32 %v1190, %v1191
        %v1193 = vsel %vm812, %v1070, 0.0
        %v1194 = vadd.f32 %v1192, %v1193
        %v1195 = vsel %vm812, %v1071, 0.0
        %v1196 = vadd.f32 %v1194, %v1195
        %v1197 = vsel %vm812, %v1072, 0.0
        %v1198 = vadd.f32 %v1196, %v1197
        %v1199 = vsel %vm812, %v1073, 0.0
        %v1200 = vadd.f32 %v1198, %v1199
        %v1201 = vrot.slane %v1200, 4
        %v1202 = vadd.f32 %v1200, %v1201
        %v1203 = vrot.slane %v1202, 2
        %v1204 = vadd.f32 %v1202, %v1203
        %v1205 = vrot.slane %v1204, 1
        %v1206 = vadd.f32 %v1204, %v1205
        %v1207 = vld [vmem:[#allocation2] sm:$0x3]
        %vm1208 = vcmask 1040384
        %v1209 = vsel %vm1208, %v1009, %v1206
        %v1210 = vadd.f32 %v1207, %v1209
        %vm1211 = vcmask 254976
        %1212 = vst.msk [vmem:[#allocation2] sm:$0x3] %vm1211, %v1210
        %v1213 = vld [vmem:[#allocation2] sm:$0x3]
        %1214 = vst.msk [vmem:[#allocation3] sm:$0x3] %vm1211, %v1213
        %s1215 = smul.u32 64, %s16
        %p1216 = scmp.lt.s32.totalorder %s1215, 127
        %s1217 = scalar_select %p1216, %s1215, 127
        %s1218 = smul.addr %s1217, 8
        %s1219 = scalar_lea.vmem %s2, %s1218
        // Predicated region
        $region33: #{tpu_custom_call.1} parent=27 // pred_check
          %p1220 = pneg %p81
        $region34: #{tpu_custom_call.1} parent=27 // pred_check_branch
          %1222 = sbr.rel (%p1220) target = $region36
        $region35: #{tpu_custom_call.1} parent=27 // pred_region
          %s1223 = smul.u32 64, %s16
        $region36: #{tpu_custom_call.1} parent=27 // pred_fallthru
          _
        // Predicated region
        $region37: #{tpu_custom_call.1} parent=27 // pred_check
          %p1224 = pneg %p102
        $region38: #{tpu_custom_call.1} parent=27 // pred_check_branch
          %1226 = sbr.rel (%p1224) target = $region40
        $region39: #{tpu_custom_call.1} parent=27 // pred_region
          %s1228 = ssub.s32 32, 32
          %1229 = vsyncadd [#allocation4], %s1228
          %s1231 = sshll.u32 [#allocation3], 4
          %s1232 = int_to_ptr.vmem [resolvable:$true] %s1231
          %1234 = dma.vmem_to_hbm [thread:$0]  %s1232, 32, %s3, [#allocation4]
        $region40: #{tpu_custom_call.1} parent=27 // pred_fallthru
          _
        // Predicated region
        $region41: #{tpu_custom_call.1} parent=27 // pred_check
          %p1235 = pneg %p102
        $region42: #{tpu_custom_call.1} parent=27 // pred_check_branch
          %1237 = sbr.rel (%p1235) target = $region44
        $region43: #{tpu_custom_call.1} parent=27 // pred_region
          %1238 = dma.done [#allocation4], 32
        $region44: #{tpu_custom_call.1} parent=27 // pred_fallthru
          _
      $region28: #{tpu_custom_call.1} parent=5 // pred_fallthru
        _
      %p1239 = scmp.le.s32.totalorder 2, %s11
      // Predicated region
      $region45: #{tpu_custom_call.1} parent=5 // pred_check
        %p1240 = pneg %p1239
      $region46: #{tpu_custom_call.1} parent=5 // pred_check_branch
        %1242 = sbr.rel (%p1240) target = $region48
      $region47: #{tpu_custom_call.1} parent=5 // pred_region
        %s1243 = ssub.s32 %s11, 2
        // Predicated region
        $region49: #{tpu_custom_call.1} parent=47 // pred_check
          %p1244 = pneg %p87
        $region50: #{tpu_custom_call.1} parent=47 // pred_check_branch
          %1246 = sbr.rel (%p1244) target = $region52
        $region51: #{tpu_custom_call.1} parent=47 // pred_region
          %s1247 = smul.u32 64, %s17
          %p1248 = scmp.lt.s32.totalorder %s1247, 127
          %s1249 = scalar_select %p1248, %s1247, 127
          %s1250 = smul.addr %s1249, 8
          %s1251 = scalar_lea.vmem %s2, %s1250
        $region52: #{tpu_custom_call.1} parent=47 // pred_fallthru
          _
      $region48: #{tpu_custom_call.1} parent=5 // pred_fallthru
        _
    $region6: #{tpu_custom_call.1} parent=1 // loop_footer
      %s15 = sadd.s32 1, %s11
    $region7: #{tpu_custom_call.1} parent=1 // loop_footer_branch
      %10 = sbr.rel target = $region3
    $region8: #{tpu_custom_call.1} parent=1 // loop_exit
      _
    %1252 = vsyncpa [#allocation4], 1
    %s1253 = scalar_lea.sflag [#allocation4], 1
    %1254 = vsyncpa %s1253, 1

</llo_original>
